<compile_context>
chip_gen: v7x
topology: tpu7x:2x2x1
jax: 0.10.0
libtpu: 0.0.40
codegen_flags: <defaults>
</compile_context>

<pallas_src>
import jax
import jax.numpy as jnp
from jax.experimental import pallas as pl
from jax.experimental.pallas import tpu as pltpu

_LANE = 128
_SUBLANE = 8


def _round_up(n, m):
    return ((n + m - 1) // m) * m


def _mlp_kernel(x_ref, w1_ref, b1_ref, w2_ref, b2_ref, w3_ref, b3_ref, o_ref):
    # Layer 1: Linear(window_size -> 100, padded to 128) + ReLU.
    # bf16 operands on the MXU, f32 accumulation.
    x = x_ref[...].astype(jnp.bfloat16)
    h1 = jnp.dot(x, w1_ref[...], preferred_element_type=jnp.float32)
    h1 = jnp.maximum(h1 + b1_ref[...], 0.0)
    # Dropout(0.5) -> identity in eval mode.

    # Layer 2: Linear(128 padded -> 50, padded to 128) + ReLU.
    h2 = jnp.dot(h1.astype(jnp.bfloat16), w2_ref[...],
                 preferred_element_type=jnp.float32)
    h2 = jnp.maximum(h2 + b2_ref[...], 0.0)
    # Dropout(0.5) -> identity in eval mode.

    # Layer 3: Linear(128 padded -> num_phase). Tiny f32 matmul (N = num_phase),
    # kept in f32 for best output accuracy; cost is negligible.
    out = jnp.dot(h2, w3_ref[...], preferred_element_type=jnp.float32)
    out = out + b3_ref[...]
    o_ref[...] = out.astype(o_ref.dtype)


def prepare_params(params):
    """One-time weight padding + bf16 casting (hoisted out of the forward call).

    Hidden dims are zero-padded up to 128 lanes; the padded bias lanes are 0 so
    padded activation lanes stay exactly 0 through ReLU and the next matmul.
    The output dim of w3 is NOT padded (it stays num_phase wide).
    """
    h1 = params["w1"].shape[1]        # 100
    h2 = params["w2"].shape[1]        # 50
    h1p = _round_up(h1, _LANE)        # 128
    h2p = _round_up(h2, _LANE)        # 128

    w1 = jnp.pad(params["w1"], ((0, 0), (0, h1p - h1))).astype(jnp.bfloat16)
    b1 = jnp.pad(params["b1"], (0, h1p - h1)).reshape(1, h1p).astype(jnp.float32)
    w2 = jnp.pad(params["w2"], ((0, h1p - h1), (0, h2p - h2))).astype(jnp.bfloat16)
    b2 = jnp.pad(params["b2"], (0, h2p - h2)).reshape(1, h2p).astype(jnp.float32)
    w3 = jnp.pad(params["w3"], ((0, h2p - h2), (0, 0))).astype(jnp.float32)
    b3 = params["b3"].reshape(1, -1).astype(jnp.float32)
    return {"w1": w1, "b1": b1, "w2": w2, "b2": b2, "w3": w3, "b3": b3}


def phase_assignment_forward(x, prepared, *, block_m=1024):
    """x: [batch, window_size]. prepared: output of prepare_params()."""
    batch, window_size = x.shape
    h1p = prepared["w1"].shape[1]
    h2p = prepared["w2"].shape[1]
    num_phase = prepared["w3"].shape[1]

    # Batch tile: as large as is useful (amortizes ~600-cycle per-step
    # overhead), never larger than the sublane-rounded batch, and capped so the
    # grid has >= 2 steps when batch allows it (so both TCs work on v7x).
    bm = min(block_m, _round_up(batch, _SUBLANE))
    if batch > _SUBLANE:
        bm = min(bm, _round_up(pl.cdiv(batch, 2), _SUBLANE))
    bm = max(bm, _SUBLANE)
    grid = (pl.cdiv(batch, bm),)   # ragged last block: masked stores, no padding

    out = pl.pallas_call(
        _mlp_kernel,
        out_shape=jax.ShapeDtypeStruct((batch, num_phase), jnp.float32),
        grid_spec=pl.GridSpec(
            grid=grid,
            in_specs=[
                # x tiled over batch; all weights/biases grid-invariant.
                pl.BlockSpec((bm, window_size), lambda i: (i, 0)),
                pl.BlockSpec((window_size, h1p), lambda i: (0, 0)),
                pl.BlockSpec((1, h1p), lambda i: (0, 0)),
                pl.BlockSpec((h1p, h2p), lambda i: (0, 0)),
                pl.BlockSpec((1, h2p), lambda i: (0, 0)),
                pl.BlockSpec((h2p, num_phase), lambda i: (0, 0)),
                pl.BlockSpec((1, num_phase), lambda i: (0, 0)),
            ],
            # Last dim equals the full array dim (num_phase), so no 128-lane
            # padding / wrapper slice is needed; writeback is 32x smaller.
            out_specs=pl.BlockSpec((bm, num_phase), lambda i: (i, 0)),
        ),
        compiler_params=pltpu.CompilerParams(
            dimension_semantics=("parallel",),
        ),
    )(x, prepared["w1"], prepared["b1"], prepared["w2"], prepared["b2"],
      prepared["w3"], prepared["b3"])
    return out


def init_params(key, window_size, num_phase):
    """Deterministic parameter init (shapes match the nn.Linear layers)."""
    k1, k2, k3, k4, k5, k6 = jax.random.split(key, 6)

    def linear_init(kw, kb, fan_in, fan_out):
        bound = 1.0 / jnp.sqrt(fan_in)
        w = jax.random.uniform(kw, (fan_in, fan_out), jnp.float32, -bound, bound)
        b = jax.random.uniform(kb, (fan_out,), jnp.float32, -bound, bound)
        return w, b

    w1, b1 = linear_init(k1, k2, window_size, 100)
    w2, b2 = linear_init(k3, k4, 100, 50)
    w3, b3 = linear_init(k5, k6, 50, num_phase)
    return {"w1": w1, "b1": b1, "w2": w2, "b2": b2, "w3": w3, "b3": b3}


def reference_forward(x, p):
    h = jnp.maximum(x @ p["w1"] + p["b1"], 0.0)
    h = jnp.maximum(h @ p["w2"] + p["b2"], 0.0)
    return h @ p["w3"] + p["b3"]


if __name__ == "__main__":
    window_size = 32
    num_phase = 4
    batch = 20  # not a multiple of 8 -> exercises ragged last block

    key = jax.random.PRNGKey(0)
    kx, kp = jax.random.split(key)
    x = jax.random.normal(kx, (batch, window_size), dtype=jnp.float32)
    params = init_params(kp, window_size, num_phase)
    prepared = prepare_params(params)   # one-time pad + bf16 cast

    out = phase_assignment_forward(x, prepared)
    out = jax.block_until_ready(out)

    ref = reference_forward(x, params)
    assert out.shape == (batch, num_phase)
    # bf16 matmul operands (f32 accumulation) -> loosened tolerance vs f32 ref.
    assert jnp.allclose(out, ref, atol=3e-2, rtol=3e-2), (
        f"mismatch vs reference, max abs diff={jnp.max(jnp.abs(out - ref))}")

    print("KERNEL_OK")
</pallas_src>

<mosaic_0001>
module attributes {stable_mosaic.version = 11 : i64} {
  func.func @_mlp_kernel(%arg0: i32, %arg1: memref<16x32xf32, #tpu.memory_space<vmem>>, %arg2: memref<32x128xbf16, #tpu.memory_space<vmem>>, %arg3: memref<1x128xf32, #tpu.memory_space<vmem>>, %arg4: memref<128x128xbf16, #tpu.memory_space<vmem>>, %arg5: memref<1x128xf32, #tpu.memory_space<vmem>>, %arg6: memref<128x4xf32, #tpu.memory_space<vmem>>, %arg7: memref<1x4xf32, #tpu.memory_space<vmem>>, %arg8: memref<16x4xf32, #tpu.memory_space<vmem>>) attributes {dimension_semantics = [#tpu.dimension_semantics<parallel>], iteration_bounds = array<i64: 2>, scalar_prefetch = 0 : i64, scratch_operands = 0 : i64, tpu.core_type = #tpu.core_type<tc>, window_params = [{transform_indices = @transform_0, window_bounds = array<i64: 16, 32>}, {pipeline_mode = #tpu.pipeline_mode<synchronous>, transform_indices = @transform_1, window_bounds = array<i64: 32, 128>}, {pipeline_mode = #tpu.pipeline_mode<synchronous>, transform_indices = @transform_2, window_bounds = array<i64: 1, 128>}, {pipeline_mode = #tpu.pipeline_mode<synchronous>, transform_indices = @transform_3, window_bounds = array<i64: 128, 128>}, {pipeline_mode = #tpu.pipeline_mode<synchronous>, transform_indices = @transform_4, window_bounds = array<i64: 1, 128>}, {pipeline_mode = #tpu.pipeline_mode<synchronous>, transform_indices = @transform_5, window_bounds = array<i64: 128, 4>}, {pipeline_mode = #tpu.pipeline_mode<synchronous>, transform_indices = @transform_6, window_bounds = array<i64: 1, 4>}, {transform_indices = @transform_7, window_bounds = array<i64: 16, 4>}]} {
    %c0 = arith.constant 0 : index
    %c0_0 = arith.constant 0 : index
    %0 = vector.load %arg1[%c0, %c0_0] : memref<16x32xf32, #tpu.memory_space<vmem>>, vector<16x32xf32>
    %1 = arith.truncf %0 : vector<16x32xf32> to vector<16x32xbf16>
    %c0_1 = arith.constant 0 : index
    %c0_2 = arith.constant 0 : index
    %2 = vector.load %arg2[%c0_1, %c0_2] : memref<32x128xbf16, #tpu.memory_space<vmem>>, vector<32x128xbf16>
    %cst = arith.constant dense<0.000000e+00> : vector<16x128xf32>
    %3 = tpu.matmul %1, %2, %cst {dimension_numbers = #tpu.dot_dimension_numbers<[1], [0], [0], [1], [0, 0, 1, 1], [], []>} : vector<16x32xbf16>, vector<32x128xbf16>, vector<16x128xf32> -> vector<16x128xf32>
    %c0_3 = arith.constant 0 : index
    %c0_4 = arith.constant 0 : index
    %4 = vector.load %arg3[%c0_3, %c0_4] : memref<1x128xf32, #tpu.memory_space<vmem>>, vector<1x128xf32>
    %5 = vector.broadcast %4 : vector<1x128xf32> to vector<16x128xf32>
    %6 = arith.addf %3, %5 : vector<16x128xf32>
    %cst_5 = arith.constant 0.000000e+00 : f32
    %7 = vector.broadcast %cst_5 : f32 to vector<16x128xf32>
    %8 = arith.maximumf %6, %7 : vector<16x128xf32>
    %9 = arith.truncf %8 : vector<16x128xf32> to vector<16x128xbf16>
    %c0_6 = arith.constant 0 : index
    %c0_7 = arith.constant 0 : index
    %10 = vector.load %arg4[%c0_6, %c0_7] : memref<128x128xbf16, #tpu.memory_space<vmem>>, vector<128x128xbf16>
    %cst_8 = arith.constant dense<0.000000e+00> : vector<16x128xf32>
    %11 = tpu.matmul %9, %10, %cst_8 {dimension_numbers = #tpu.dot_dimension_numbers<[1], [0], [0], [1], [0, 0, 1, 1], [], []>} : vector<16x128xbf16>, vector<128x128xbf16>, vector<16x128xf32> -> vector<16x128xf32>
    %c0_9 = arith.constant 0 : index
    %c0_10 = arith.constant 0 : index
    %12 = vector.load %arg5[%c0_9, %c0_10] : memref<1x128xf32, #tpu.memory_space<vmem>>, vector<1x128xf32>
    %13 = vector.broadcast %12 : vector<1x128xf32> to vector<16x128xf32>
    %14 = arith.addf %11, %13 : vector<16x128xf32>
    %cst_11 = arith.constant 0.000000e+00 : f32
    %15 = vector.broadcast %cst_11 : f32 to vector<16x128xf32>
    %16 = arith.maximumf %14, %15 : vector<16x128xf32>
    %c0_12 = arith.constant 0 : index
    %c0_13 = arith.constant 0 : index
    %17 = vector.load %arg6[%c0_12, %c0_13] : memref<128x4xf32, #tpu.memory_space<vmem>>, vector<128x4xf32>
    %cst_14 = arith.constant dense<0.000000e+00> : vector<16x4xf32>
    %18 = tpu.matmul %16, %17, %cst_14 {dimension_numbers = #tpu.dot_dimension_numbers<[1], [0], [0], [1], [0, 0, 1, 1], [], []>} : vector<16x128xf32>, vector<128x4xf32>, vector<16x4xf32> -> vector<16x4xf32>
    %c0_15 = arith.constant 0 : index
    %c0_16 = arith.constant 0 : index
    %19 = vector.load %arg7[%c0_15, %c0_16] : memref<1x4xf32, #tpu.memory_space<vmem>>, vector<1x4xf32>
    %20 = vector.broadcast %19 : vector<1x4xf32> to vector<16x4xf32>
    %21 = arith.addf %18, %20 : vector<16x4xf32>
    %c0_17 = arith.constant 0 : index
    %c0_18 = arith.constant 0 : index
    %22 = vector.load %arg8[%c0_17, %c0_18] : memref<16x4xf32, #tpu.memory_space<vmem>>, vector<16x4xf32>
    tpu.vector_store %arg8[%c0_17, %c0_18], %21 {strides = array<i32>} : memref<16x4xf32, #tpu.memory_space<vmem>>, vector<16x4xf32>,
    return
  }
  func.func @transform_0(%arg0: i32) -> (i32, i32) {
    %c0_i32 = arith.constant 0 : i32
    %c0_i32_0 = arith.constant 0 : i32
    return %arg0, %c0_i32 : i32, i32
  }
  func.func @transform_1(%arg0: i32) -> (i32, i32) {
    %c0_i32 = arith.constant 0 : i32
    %c0_i32_0 = arith.constant 0 : i32
    %c0_i32_1 = arith.constant 0 : i32
    return %c0_i32, %c0_i32_0 : i32, i32
  }
  func.func @transform_2(%arg0: i32) -> (i32, i32) {
    %c0_i32 = arith.constant 0 : i32
    %c0_i32_0 = arith.constant 0 : i32
    %c0_i32_1 = arith.constant 0 : i32
    return %c0_i32, %c0_i32_0 : i32, i32
  }
  func.func @transform_3(%arg0: i32) -> (i32, i32) {
    %c0_i32 = arith.constant 0 : i32
    %c0_i32_0 = arith.constant 0 : i32
    %c0_i32_1 = arith.constant 0 : i32
    return %c0_i32, %c0_i32_0 : i32, i32
  }
  func.func @transform_4(%arg0: i32) -> (i32, i32) {
    %c0_i32 = arith.constant 0 : i32
    %c0_i32_0 = arith.constant 0 : i32
    %c0_i32_1 = arith.constant 0 : i32
    return %c0_i32, %c0_i32_0 : i32, i32
  }
  func.func @transform_5(%arg0: i32) -> (i32, i32) {
    %c0_i32 = arith.constant 0 : i32
    %c0_i32_0 = arith.constant 0 : i32
    %c0_i32_1 = arith.constant 0 : i32
    return %c0_i32, %c0_i32_0 : i32, i32
  }
  func.func @transform_6(%arg0: i32) -> (i32, i32) {
    %c0_i32 = arith.constant 0 : i32
    %c0_i32_0 = arith.constant 0 : i32
    %c0_i32_1 = arith.constant 0 : i32
    return %c0_i32, %c0_i32_0 : i32, i32
  }
  func.func @transform_7(%arg0: i32) -> (i32, i32) {
    %c0_i32 = arith.constant 0 : i32
    %c0_i32_0 = arith.constant 0 : i32
    return %arg0, %c0_i32 : i32, i32
  }
}

</mosaic_0001>

<llo_original>
// kernel: tpu_custom_call.1
$region0: #{tpu_custom_call.1}
  #allocation0 [shape = 'u32[]', space=smem, size = 0x4, offset = 0x4, fixed_abs, tag = 'smem constant byte address 0x4 - core index']
  #allocation1 [shape = 'u32[144,128]{1,0:T(1,128)}', space=vmem, size = 0x12000, scoped, tag = 'internal scratch']
  %s0 = inlined_call_operand.vmem [shape: f32[20,32], index: 0, kind: input, shape index: {}]
  %s1 = inlined_call_operand.vmem [shape: bf16[32,128], index: 1, kind: input, shape index: {}]
  %s2 = inlined_call_operand.vmem [shape: f32[1,128], index: 2, kind: input, shape index: {}]
  %s3 = inlined_call_operand.vmem [shape: bf16[128,128], index: 3, kind: input, shape index: {}]
  %s4 = inlined_call_operand.vmem [shape: f32[1,128], index: 4, kind: input, shape index: {}]
  %s5 = inlined_call_operand.vmem [shape: f32[128,4], index: 5, kind: input, shape index: {}]
  %s6 = inlined_call_operand.vmem [shape: f32[1,4], index: 6, kind: input, shape index: {}]
  %s7 = inlined_call_operand.vmem [shape: f32[20,4], index: 7, kind: output, shape index: {}]
  %s8 = sld [smem:[#allocation0]]
  $region109: #{tpu_custom_call.1} parent=0
    _
  %s10 = ssub.s32 1, %s8
  %s11 = scalar_select 0, %s10, %s8
  $region1: #{tpu_custom_call.1} parent=0
    #allocation2 [shape = 'u8[16384]{0}', space=vmem, size = 0x4000, scoped, tag = 'output window, operand 0']
    loop: start=0, step=1, limit=4
    $region2: #{tpu_custom_call.1} parent=1 // loop_pre_header
      _
    $region3: #{tpu_custom_call.1} parent=1 // loop_header
      %s13 = sphi 0, %s17
      %p14 = scmp.ge.s32.totalorder %s13, 4
      %s23 = sphi 0, %s25
      %s26 = sphi 0, %s23
      %s27 = sphi 0, %s26
      %s43 = sphi 0, %s27
      %s47 = sphi 0, %s47
      %s49 = sphi 0, %s47
      %s50 = sphi 0, %s49
      %s64 = sphi 0, %s50
      %s68 = sphi 0, %s68
      %s70 = sphi 0, %s68
      %s71 = sphi 0, %s70
      %s85 = sphi 0, %s71
      %s89 = sphi 0, %s89
      %s91 = sphi 0, %s89
      %s92 = sphi 0, %s91
      %s106 = sphi 0, %s92
      %s110 = sphi 0, %s110
      %s112 = sphi 0, %s110
      %s113 = sphi 0, %s112
      %s127 = sphi 0, %s113
      %s131 = sphi 0, %s131
      %s133 = sphi 0, %s131
      %s134 = sphi 0, %s133
      %s148 = sphi 0, %s134
      %s152 = sphi 0, %s152
      %s154 = sphi 0, %s152
      %s155 = sphi 0, %s154
      %s169 = sphi 0, %s155
      %s175 = sphi 0, %s177
      %s178 = sphi 0, %s175
      %s179 = sphi 0, %s178
      %s195 = sphi 0, %s179
    $region4: #{tpu_custom_call.1} parent=1 // loop_header_branch
      %16 = sbr.rel (%p14) target = $region8
    $region5: #{tpu_custom_call.1} parent=1 // loop_body
      %s18 = ssub.s32 %s13, 1
      %s19 = ssub.s32 %s13, 2
      %s20 = sadd.s32 %s13, 1
      %s21 = ssub.s32 %s13, %s20
      %p22 = scmp.eq.s32.totalorder %s21, 0
      %s24 = sadd.s32 %s23, 1
      %s25 = scalar_select %p22, %s23, %s24
      %p28 = pneg %p22
      %p29 = scmp.eq.s32.totalorder %s13, 1
      %p30 = por %p28, %p29
      %p31 = scmp.ne.s32.totalorder %s23, %s26
      %p32 = scmp.eq.s32.totalorder %s13, 0
      %p33 = por %p31, %p32
      %p34 = scmp.ne.s32.totalorder %s23, %s26
      %p35 = scmp.eq.s32.totalorder %s18, 1
      %p36 = por %p34, %p35
      %p37 = scmp.ne.s32.totalorder %s26, %s27
      %p38 = scmp.eq.s32.totalorder %s18, 0
      %p39 = por %p37, %p38
      %p40 = scmp.ne.s32.totalorder %s26, %s27
      %p41 = scmp.eq.s32.totalorder %s19, 1
      %p42 = por %p40, %p41
      %p44 = scmp.ne.s32.totalorder %s27, %s43
      %p45 = scmp.eq.s32.totalorder %s19, 0
      %p46 = por %p44, %p45
      %s48 = sadd.s32 %s47, 1
      %p51 = scmp.eq.s32.totalorder %s13, 1
      %p52 = scmp.ne.s32.totalorder %s47, %s49
      %p53 = scmp.eq.s32.totalorder %s13, 0
      %p54 = por %p52, %p53
      %p55 = scmp.ne.s32.totalorder %s47, %s49
      %p56 = scmp.eq.s32.totalorder %s18, 1
      %p57 = por %p55, %p56
      %p58 = scmp.ne.s32.totalorder %s49, %s50
      %p59 = scmp.eq.s32.totalorder %s18, 0
      %p60 = por %p58, %p59
      %p61 = scmp.ne.s32.totalorder %s49, %s50
      %p62 = scmp.eq.s32.totalorder %s19, 1
      %p63 = por %p61, %p62
      %p65 = scmp.ne.s32.totalorder %s50, %s64
      %p66 = scmp.eq.s32.totalorder %s19, 0
      %p67 = por %p65, %p66
      %s69 = sadd.s32 %s68, 1
      %p72 = scmp.eq.s32.totalorder %s13, 1
      %p73 = scmp.ne.s32.totalorder %s68, %s70
      %p74 = scmp.eq.s32.totalorder %s13, 0
      %p75 = por %p73, %p74
      %p76 = scmp.ne.s32.totalorder %s68, %s70
      %p77 = scmp.eq.s32.totalorder %s18, 1
      %p78 = por %p76, %p77
      %p79 = scmp.ne.s32.totalorder %s70, %s71
      %p80 = scmp.eq.s32.totalorder %s18, 0
      %p81 = por %p79, %p80
      %p82 = scmp.ne.s32.totalorder %s70, %s71
      %p83 = scmp.eq.s32.totalorder %s19, 1
      %p84 = por %p82, %p83
      %p86 = scmp.ne.s32.totalorder %s71, %s85
      %p87 = scmp.eq.s32.totalorder %s19, 0
      %p88 = por %p86, %p87
      %s90 = sadd.s32 %s89, 1
      %p93 = scmp.eq.s32.totalorder %s13, 1
      %p94 = scmp.ne.s32.totalorder %s89, %s91
      %p95 = scmp.eq.s32.totalorder %s13, 0
      %p96 = por %p94, %p95
      %p97 = scmp.ne.s32.totalorder %s89, %s91
      %p98 = scmp.eq.s32.totalorder %s18, 1
      %p99 = por %p97, %p98
      %p100 = scmp.ne.s32.totalorder %s91, %s92
      %p101 = scmp.eq.s32.totalorder %s18, 0
      %p102 = por %p100, %p101
      %p103 = scmp.ne.s32.totalorder %s91, %s92
      %p104 = scmp.eq.s32.totalorder %s19, 1
      %p105 = por %p103, %p104
      %p107 = scmp.ne.s32.totalorder %s92, %s106
      %p108 = scmp.eq.s32.totalorder %s19, 0
      %p109 = por %p107, %p108
      %s111 = sadd.s32 %s110, 1
      %p114 = scmp.eq.s32.totalorder %s13, 1
      %p115 = scmp.ne.s32.totalorder %s110, %s112
      %p116 = scmp.eq.s32.totalorder %s13, 0
      %p117 = por %p115, %p116
      %p118 = scmp.ne.s32.totalorder %s110, %s112
      %p119 = scmp.eq.s32.totalorder %s18, 1
      %p120 = por %p118, %p119
      %p121 = scmp.ne.s32.totalorder %s112, %s113
      %p122 = scmp.eq.s32.totalorder %s18, 0
      %p123 = por %p121, %p122
      %p124 = scmp.ne.s32.totalorder %s112, %s113
      %p125 = scmp.eq.s32.totalorder %s19, 1
      %p126 = por %p124, %p125
      %p128 = scmp.ne.s32.totalorder %s113, %s127
      %p129 = scmp.eq.s32.totalorder %s19, 0
      %p130 = por %p128, %p129
      %s132 = sadd.s32 %s131, 1
      %p135 = scmp.eq.s32.totalorder %s13, 1
      %p136 = scmp.ne.s32.totalorder %s131, %s133
      %p137 = scmp.eq.s32.totalorder %s13, 0
      %p138 = por %p136, %p137
      %p139 = scmp.ne.s32.totalorder %s131, %s133
      %p140 = scmp.eq.s32.totalorder %s18, 1
      %p141 = por %p139, %p140
      %p142 = scmp.ne.s32.totalorder %s133, %s134
      %p143 = scmp.eq.s32.totalorder %s18, 0
      %p144 = por %p142, %p143
      %p145 = scmp.ne.s32.totalorder %s133, %s134
      %p146 = scmp.eq.s32.totalorder %s19, 1
      %p147 = por %p145, %p146
      %p149 = scmp.ne.s32.totalorder %s134, %s148
      %p150 = scmp.eq.s32.totalorder %s19, 0
      %p151 = por %p149, %p150
      %s153 = sadd.s32 %s152, 1
      %p156 = scmp.eq.s32.totalorder %s13, 1
      %p157 = scmp.ne.s32.totalorder %s152, %s154
      %p158 = scmp.eq.s32.totalorder %s13, 0
      %p159 = por %p157, %p158
      %p160 = scmp.ne.s32.totalorder %s152, %s154
      %p161 = scmp.eq.s32.totalorder %s18, 1
      %p162 = por %p160, %p161
      %p163 = scmp.ne.s32.totalorder %s154, %s155
      %p164 = scmp.eq.s32.totalorder %s18, 0
      %p165 = por %p163, %p164
      %p166 = scmp.ne.s32.totalorder %s154, %s155
      %p167 = scmp.eq.s32.totalorder %s19, 1
      %p168 = por %p166, %p167
      %p170 = scmp.ne.s32.totalorder %s155, %s169
      %p171 = scmp.eq.s32.totalorder %s19, 0
      %p172 = por %p170, %p171
      %s173 = ssub.s32 %s13, %s20
      %p174 = scmp.eq.s32.totalorder %s173, 0
      %s176 = sadd.s32 %s175, 1
      %s177 = scalar_select %p174, %s175, %s176
      %p180 = pneg %p174
      %p181 = scmp.eq.s32.totalorder %s13, 1
      %p182 = por %p180, %p181
      %p183 = scmp.ne.s32.totalorder %s175, %s178
      %p184 = scmp.eq.s32.totalorder %s13, 0
      %p185 = por %p183, %p184
      %p186 = scmp.ne.s32.totalorder %s175, %s178
      %p187 = scmp.eq.s32.totalorder %s18, 1
      %p188 = por %p186, %p187
      %p189 = scmp.ne.s32.totalorder %s178, %s179
      %p190 = scmp.eq.s32.totalorder %s18, 0
      %p191 = por %p189, %p190
      %p192 = scmp.ne.s32.totalorder %s178, %s179
      %p193 = scmp.eq.s32.totalorder %s19, 1
      %p194 = por %p192, %p193
      %p196 = scmp.ne.s32.totalorder %s179, %s195
      %p197 = scmp.eq.s32.totalorder %s19, 0
      %p198 = por %p196, %p197
      %p199 = scmp.le.s32.totalorder 1, %s13
      %p200 = scmp.lt.s32.totalorder %s13, 3
      %p201 = pnand %p199, %p200
      %p202 = pneg %p201
      // Predicated region
      $region9: #{tpu_custom_call.1} parent=5 // pred_check
        _
      $region10: #{tpu_custom_call.1} parent=5 // pred_check_branch
        %204 = sbr.rel (%p201) target = $region12
      $region11: #{tpu_custom_call.1} parent=5 // pred_region
        %s205 = ssub.s32 %s13, 1
        // Predicated region
        $region13: #{tpu_custom_call.1} parent=11 // pred_check
          %p206 = pneg %p60
        $region14: #{tpu_custom_call.1} parent=11 // pred_check_branch
          %208 = sbr.rel (%p206) target = $region16
        $region15: #{tpu_custom_call.1} parent=11 // pred_region
          _
        $region16: #{tpu_custom_call.1} parent=11 // pred_fallthru
          _
        // Predicated region
        $region17: #{tpu_custom_call.1} parent=11 // pred_check
          %p209 = pneg %p81
        $region18: #{tpu_custom_call.1} parent=11 // pred_check_branch
          %211 = sbr.rel (%p209) target = $region20
        $region19: #{tpu_custom_call.1} parent=11 // pred_region
          _
        $region20: #{tpu_custom_call.1} parent=11 // pred_fallthru
          _
        // Predicated region
        $region21: #{tpu_custom_call.1} parent=11 // pred_check
          %p212 = pneg %p102
        $region22: #{tpu_custom_call.1} parent=11 // pred_check_branch
          %214 = sbr.rel (%p212) target = $region24
        $region23: #{tpu_custom_call.1} parent=11 // pred_region
          _
        $region24: #{tpu_custom_call.1} parent=11 // pred_fallthru
          _
        // Predicated region
        $region25: #{tpu_custom_call.1} parent=11 // pred_check
          %p215 = pneg %p123
        $region26: #{tpu_custom_call.1} parent=11 // pred_check_branch
          %217 = sbr.rel (%p215) target = $region28
        $region27: #{tpu_custom_call.1} parent=11 // pred_region
          _
        $region28: #{tpu_custom_call.1} parent=11 // pred_fallthru
          _
        // Predicated region
        $region29: #{tpu_custom_call.1} parent=11 // pred_check
          %p218 = pneg %p144
        $region30: #{tpu_custom_call.1} parent=11 // pred_check_branch
          %220 = sbr.rel (%p218) target = $region32
        $region31: #{tpu_custom_call.1} parent=11 // pred_region
          _
        $region32: #{tpu_custom_call.1} parent=11 // pred_fallthru
          _
        // Predicated region
        $region33: #{tpu_custom_call.1} parent=11 // pred_check
          %p221 = pneg %p165
        $region34: #{tpu_custom_call.1} parent=11 // pred_check_branch
          %223 = sbr.rel (%p221) target = $region36
        $region35: #{tpu_custom_call.1} parent=11 // pred_region
          _
        $region36: #{tpu_custom_call.1} parent=11 // pred_fallthru
          _
      $region12: #{tpu_custom_call.1} parent=5 // pred_fallthru
        _
      %p224 = scmp.lt.s32.totalorder %s13, 2
      // Predicated region
      $region37: #{tpu_custom_call.1} parent=5 // pred_check
        %p225 = pneg %p224
      $region38: #{tpu_custom_call.1} parent=5 // pred_check_branch
        %227 = sbr.rel (%p225) target = $region40
      $region39: #{tpu_custom_call.1} parent=5 // pred_region
        // Predicated region
        $region41: #{tpu_custom_call.1} parent=39 // pred_check
          %p228 = pneg %p33
        $region42: #{tpu_custom_call.1} parent=39 // pred_check_branch
          %230 = sbr.rel (%p228) target = $region44
        $region43: #{tpu_custom_call.1} parent=39 // pred_region
          %s231 = smul.u32 2, %s13
          %s232 = ssub.s32 3, %s231
          %p233 = scmp.lt.s32.totalorder %s232, 2
          %s234 = scalar_select %p233, %s232, 2
          %s235 = smul.u32 128, %s234
          %p236 = scmp.lt.s32.totalorder %s231, 2
          %s237 = scalar_select %p236, %s231, 2
          %s238 = smul.addr %s237, 8
          %s239 = scalar_lea.vmem %s0, %s238
          %s240 = smul.u32 2, %s13
          %s241 = ssub.s32 3, %s240
          %p242 = scmp.lt.s32.totalorder %s241, 2
          %s243 = scalar_select %p242, %s241, 2
          %s244 = smul.u32 128, %s243
        $region44: #{tpu_custom_call.1} parent=39 // pred_fallthru
          _
      $region40: #{tpu_custom_call.1} parent=5 // pred_fallthru
        _
      %p245 = scmp.le.s32.totalorder 1, %s13
      %p246 = scmp.lt.s32.totalorder %s13, 3
      %p247 = pnand %p245, %p246
      %p248 = pneg %p247
      // Predicated region
      $region45: #{tpu_custom_call.1} parent=5 // pred_check
        _
      $region46: #{tpu_custom_call.1} parent=5 // pred_check_branch
        %250 = sbr.rel (%p247) target = $region48
      $region47: #{tpu_custom_call.1} parent=5 // pred_region
        %s251 = ssub.s32 %s13, 1
        %s252 = smul.u32 2, %s18
        %s253 = ssub.s32 3, %s252
        %p254 = scmp.lt.s32.totalorder %s253, 2
        %s255 = scalar_select %p254, %s253, 2
        %s256 = smul.u32 128, %s255
        %p257 = scmp.lt.s32.totalorder %s252, 2
        %s258 = scalar_select %p257, %s252, 2
        %s259 = smul.addr %s258, 8
        %s260 = scalar_lea.vmem %s0, %s259
        %p261 = pneg %p39
        %p262 = pneg %p36
        %p263 = pneg %p60
        %p264 = pneg %p57
        %p265 = pneg %p81
        %p266 = pneg %p78
        %p267 = pneg %p102
        %p268 = pneg %p99
        %p269 = pneg %p123
        %p270 = pneg %p120
        %p271 = pneg %p144
        %p272 = pneg %p141
        %p273 = pneg %p165
        %p274 = pneg %p162
        %p275 = pneg %p191
        %p276 = pneg %p188
        %s277 = sand.u32 %s178, 1
        %s278 = sand.u32 %s178, 1
        %s279 = smul.addr %s278, 16
        %s280 = scalar_lea.vmem [#allocation2], %s279
        %s281 = smul.u32 2, %s18
        %s282 = ssub.s32 3, %s281
        %p283 = scmp.lt.s32.totalorder %s282, 2
        %s284 = scalar_select %p283, %s282, 2
        %s285 = smul.u32 128, %s284
        %p286 = scmp.lt.s32.totalorder %s281, 2
        %s287 = scalar_select %p286, %s281, 2
        %s288 = smul.addr %s287, 8
        %s289 = scalar_lea.vmem %s0, %s288
        %s290 = smul.u32 2, %s18
        %s291 = ssub.s32 3, %s290
        %p292 = scmp.lt.s32.totalorder %s291, 2
        %s293 = scalar_select %p292, %s291, 2
        %s294 = smul.u32 128, %s293
        %s295 = smul.u32 2, %s18
        %s296 = ssub.s32 3, %s295
        %p297 = scmp.lt.s32.totalorder %s296, 2
        %s298 = scalar_select %p297, %s296, 2
        %s299 = smul.u32 128, %s298
        %v301 = vld [vmem:[%s289] sm:$0xff]
        %v302 = vld [vmem:[%s289 + $0x8] sm:$0xff]
        %v303 = vpack.c.bf16 %v302, %v301
        %v304 = vld [vmem:[%s1] sm:$0xf]
        %v305 = vld [vmem:[%s1 + $0x4] sm:$0xf]
        %v306 = vld [vmem:[%s1 + $0x8] sm:$0xf]
        %v307 = vld [vmem:[%s1 + $0xc] sm:$0xf]
        %v308 = vld [vmem:[%s2] sm:$0x1]
        %v310 = vlaneseq
        %v311 = vshrl.u32 %v310, 7
        %v312 = vsub.s32 0, %v311
        %v313 = vrot.slane %v308, %v312
        %v319 = vunpack.c.l.b16 %v304
        %v320 = vunpack.c.l.b16 %v305
        %v321 = vunpack.c.l.b16 %v306
        %v322 = vunpack.c.l.b16 %v307
        %v323 = vpack.c.b16 %v320, %v319
        %v324 = vpack.c.b16 %v322, %v321
        %vm327 = vcmask 261120
        %v329 = vsel %vm327, %v303, 0
        %331 = vmatprep.subr.bf16.mxu0 0
        %332 = vmatpush1.bf16.msra.mxu0 %v323
        %333 = vmatprep.subr.bf16.mxu0 0
        %334 = vmatpush1.bf16.msra.mxu0 %v324
        %335 = vmatprep.subr.bf16.mxu0 0
        %336 = vmatpush1.bf16.msra.mxu0 0
        %337 = vmatprep.subr.bf16.mxu0 0
        %338 = vmatpush1.bf16.msra.mxu0 0
        %339 = vmatprep.subr.bf16.mxu0 0
        %340 = vmatpush1.bf16.msra.mxu0 0
        %341 = vmatprep.subr.bf16.mxu0 0
        %342 = vmatpush1.bf16.msra.mxu0 0
        %343 = vmatprep.subr.bf16.mxu0 0
        %344 = vmatpush1.bf16.msra.mxu0 0
        %345 = vmatprep.subr.bf16.mxu0 0
        %346 = vmatpush1.bf16.msra.mxu0 0
        %347 = vmatprep.subr.bf16.mxu0 0
        %348 = vmatpush1.bf16.msra.mxu0 0
        %349 = vmatprep.subr.bf16.mxu0 0
        %350 = vmatpush1.bf16.msra.mxu0 0
        %351 = vmatprep.subr.bf16.mxu0 0
        %352 = vmatpush1.bf16.msra.mxu0 0
        %353 = vmatprep.subr.bf16.mxu0 0
        %354 = vmatpush1.bf16.msra.mxu0 0
        %355 = vmatprep.subr.bf16.mxu0 0
        %356 = vmatpush1.bf16.msra.mxu0 0
        %357 = vmatprep.subr.bf16.mxu0 0
        %358 = vmatpush1.bf16.msra.mxu0 0
        %359 = vmatprep.subr.bf16.mxu0 0
        %360 = vmatpush1.bf16.msra.mxu0 0
        %361 = vmatprep.subr.bf16.mxu0 0
        %362 = vmatpush1.bf16.msra.mxu0 0
        %363 = vmatprep.mubr.bf16.mxu0 0
        %364 = vmatmul.mubr.bf16.gmra.mrb[0].mxu0 %v329
        %v365 = vpop.f32.mrb[0].mxu0
        %v366 = vadd.f32 %v313, %v365
        %v367 = vpop.f32.mrb[0].mxu0
        %v368 = vpop.f32.mrb[0].mxu0
        %v369 = vadd.f32 %v313, %v368
        %v370 = vpop.f32.mrb[0].mxu0
        %371 = vdwg.mxu0
        %v372 = vmax.f32 %v366, 0.0
        %v373 = vmax.f32 %v369, 0.0
        %v374 = vpack.c.bf16 %v373, %v372
        %v375 = vld [vmem:[%s3] sm:$0xf]
        %v376 = vld [vmem:[%s3 + $0x4] sm:$0xf]
        %v377 = vld [vmem:[%s3 + $0x8] sm:$0xf]
        %v378 = vld [vmem:[%s3 + $0xc] sm:$0xf]
        %v379 = vld [vmem:[%s3 + $0x10] sm:$0xf]
        %v380 = vld [vmem:[%s3 + $0x14] sm:$0xf]
        %v381 = vld [vmem:[%s3 + $0x18] sm:$0xf]
        %v382 = vld [vmem:[%s3 + $0x1c] sm:$0xf]
        %v383 = vld [vmem:[%s3 + $0x20] sm:$0xf]
        %v384 = vld [vmem:[%s3 + $0x24] sm:$0xf]
        %v385 = vld [vmem:[%s3 + $0x28] sm:$0xf]
        %v386 = vld [vmem:[%s3 + $0x2c] sm:$0xf]
        %v387 = vld [vmem:[%s3 + $0x30] sm:$0xf]
        %v388 = vld [vmem:[%s3 + $0x34] sm:$0xf]
        %v389 = vld [vmem:[%s3 + $0x38] sm:$0xf]
        %v390 = vld [vmem:[%s3 + $0x3c] sm:$0xf]
        %v391 = vld [vmem:[%s4] sm:$0x1]
        %v393 = vlaneseq
        %v394 = vshrl.u32 %v393, 7
        %v395 = vsub.s32 0, %v394
        %v396 = vrot.slane %v391, %v395
        %v414 = vunpack.c.l.b16 %v375
        %v415 = vunpack.c.l.b16 %v376
        %v416 = vunpack.c.l.b16 %v377
        %v417 = vunpack.c.l.b16 %v378
        %v418 = vunpack.c.l.b16 %v379
        %v419 = vunpack.c.l.b16 %v380
        %v420 = vunpack.c.l.b16 %v381
        %v421 = vunpack.c.l.b16 %v382
        %v422 = vunpack.c.l.b16 %v383
        %v423 = vunpack.c.l.b16 %v384
        %v424 = vunpack.c.l.b16 %v385
        %v425 = vunpack.c.l.b16 %v386
        %v426 = vunpack.c.l.b16 %v387
        %v427 = vunpack.c.l.b16 %v388
        %v428 = vunpack.c.l.b16 %v389
        %v429 = vunpack.c.l.b16 %v390
        %v430 = vpack.c.b16 %v415, %v414
        %v431 = vpack.c.b16 %v417, %v416
        %v432 = vpack.c.b16 %v419, %v418
        %v433 = vpack.c.b16 %v421, %v420
        %v434 = vpack.c.b16 %v423, %v422
        %v435 = vpack.c.b16 %v425, %v424
        %v436 = vpack.c.b16 %v427, %v426
        %v437 = vpack.c.b16 %v429, %v428
        %446 = vmatprep.subr.bf16.mxu0 0
        %447 = vmatpush1.bf16.msra.mxu0 %v430
        %448 = vmatprep.subr.bf16.mxu0 0
        %449 = vmatpush1.bf16.msra.mxu0 %v431
        %450 = vmatprep.subr.bf16.mxu0 0
        %451 = vmatpush1.bf16.msra.mxu0 %v432
        %452 = vmatprep.subr.bf16.mxu0 0
        %453 = vmatpush1.bf16.msra.mxu0 %v433
        %454 = vmatprep.subr.bf16.mxu0 0
        %455 = vmatpush1.bf16.msra.mxu0 %v434
        %456 = vmatprep.subr.bf16.mxu0 0
        %457 = vmatpush1.bf16.msra.mxu0 %v435
        %458 = vmatprep.subr.bf16.mxu0 0
        %459 = vmatpush1.bf16.msra.mxu0 %v436
        %460 = vmatprep.subr.bf16.mxu0 0
        %461 = vmatpush1.bf16.msra.mxu0 %v437
        %462 = vmatprep.subr.bf16.mxu0 0
        %463 = vmatpush1.bf16.msra.mxu0 0
        %464 = vmatprep.subr.bf16.mxu0 0
        %465 = vmatpush1.bf16.msra.mxu0 0
        %466 = vmatprep.subr.bf16.mxu0 0
        %467 = vmatpush1.bf16.msra.mxu0 0
        %468 = vmatprep.subr.bf16.mxu0 0
        %469 = vmatpush1.bf16.msra.mxu0 0
        %470 = vmatprep.subr.bf16.mxu0 0
        %471 = vmatpush1.bf16.msra.mxu0 0
        %472 = vmatprep.subr.bf16.mxu0 0
        %473 = vmatpush1.bf16.msra.mxu0 0
        %474 = vmatprep.subr.bf16.mxu0 0
        %475 = vmatpush1.bf16.msra.mxu0 0
        %476 = vmatprep.subr.bf16.mxu0 0
        %477 = vmatpush1.bf16.msra.mxu0 0
        %478 = vmatprep.mubr.bf16.mxu0 0
        %479 = vmatmul.mubr.bf16.gmra.mrb[0].mxu0 %v374
        %v480 = vpop.f32.mrb[0].mxu0
        %v481 = vadd.f32 %v396, %v480
        %v482 = vpop.f32.mrb[0].mxu0
        %v483 = vpop.f32.mrb[0].mxu0
        %v484 = vadd.f32 %v396, %v483
        %v485 = vpop.f32.mrb[0].mxu0
        %486 = vdwg.mxu0
        %v487 = vmax.f32 %v481, 0.0
        %v488 = vmax.f32 %v484, 0.0
        %v489 = vld [vmem:[%s5] sm:$0xff]
        %v490 = vld [vmem:[%s5 + $0x8] sm:$0xff]
        %v491 = vld [vmem:[%s5 + $0x10] sm:$0xff]
        %v492 = vld [vmem:[%s5 + $0x18] sm:$0xff]
        %v493 = vld [vmem:[%s5 + $0x20] sm:$0xff]
        %v494 = vld [vmem:[%s5 + $0x28] sm:$0xff]
        %v495 = vld [vmem:[%s5 + $0x30] sm:$0xff]
        %v496 = vld [vmem:[%s5 + $0x38] sm:$0xff]
        %v497 = vld [vmem:[%s5 + $0x40] sm:$0xff]
        %v498 = vld [vmem:[%s5 + $0x48] sm:$0xff]
        %v499 = vld [vmem:[%s5 + $0x50] sm:$0xff]
        %v500 = vld [vmem:[%s5 + $0x58] sm:$0xff]
        %v501 = vld [vmem:[%s5 + $0x60] sm:$0xff]
        %v502 = vld [vmem:[%s5 + $0x68] sm:$0xff]
        %v503 = vld [vmem:[%s5 + $0x70] sm:$0xff]
        %v504 = vld [vmem:[%s5 + $0x78] sm:$0xff]
        %v505 = vld [vmem:[%s6] sm:$0x1]
        %v507 = vlaneseq
        %v508 = vshrl.u32 %v507, 7
        %v509 = vsub.s32 0, %v508
        %v510 = vrot.slane %v505, %v509
        %512 = vmatprep.subr.mxu0 0.0
        %513 = vmatpush1.msra.mxu0 %v489
        %514 = vmatprep.subr.mxu0 0.0
        %515 = vmatpush1.msra.mxu0 %v490
        %516 = vmatprep.subr.mxu0 0.0
        %517 = vmatpush1.msra.mxu0 %v491
        %518 = vmatprep.subr.mxu0 0.0
        %519 = vmatpush1.msra.mxu0 %v492
        %520 = vmatprep.subr.mxu0 0.0
        %521 = vmatpush1.msra.mxu0 %v493
        %522 = vmatprep.subr.mxu0 0.0
        %523 = vmatpush1.msra.mxu0 %v494
        %524 = vmatprep.subr.mxu0 0.0
        %525 = vmatpush1.msra.mxu0 %v495
        %526 = vmatprep.subr.mxu0 0.0
        %527 = vmatpush1.msra.mxu0 %v496
        %528 = vmatprep.subr.mxu0 0.0
        %529 = vmatpush1.msra.mxu0 %v497
        %530 = vmatprep.subr.mxu0 0.0
        %531 = vmatpush1.msra.mxu0 %v498
        %532 = vmatprep.subr.mxu0 0.0
        %533 = vmatpush1.msra.mxu0 %v499
        %534 = vmatprep.subr.mxu0 0.0
        %535 = vmatpush1.msra.mxu0 %v500
        %536 = vmatprep.subr.mxu0 0.0
        %537 = vmatpush1.msra.mxu0 %v501
        %538 = vmatprep.subr.mxu0 0.0
        %539 = vmatpush1.msra.mxu0 %v502
        %540 = vmatprep.subr.mxu0 0.0
        %541 = vmatpush1.msra.mxu0 %v503
        %542 = vmatprep.subr.mxu0 0.0
        %543 = vmatpush1.msra.mxu0 %v504
        %544 = vmatprep.subr.mxu0 0.0
        %545 = vmatpush1.msra.mxu0 0.0
        %546 = vmatprep.subr.mxu0 0.0
        %547 = vmatpush1.msra.mxu0 0.0
        %548 = vmatprep.subr.mxu0 0.0
        %549 = vmatpush1.msra.mxu0 0.0
        %550 = vmatprep.subr.mxu0 0.0
        %551 = vmatpush1.msra.mxu0 0.0
        %552 = vmatprep.subr.mxu0 0.0
        %553 = vmatpush1.msra.mxu0 0.0
        %554 = vmatprep.subr.mxu0 0.0
        %555 = vmatpush1.msra.mxu0 0.0
        %556 = vmatprep.subr.mxu0 0.0
        %557 = vmatpush1.msra.mxu0 0.0
        %558 = vmatprep.subr.mxu0 0.0
        %559 = vmatpush1.msra.mxu0 0.0
        %560 = vmatprep.subr.mxu0 0.0
        %561 = vmatpush1.msra.mxu0 0.0
        %562 = vmatprep.subr.mxu0 0.0
        %563 = vmatpush1.msra.mxu0 0.0
        %564 = vmatprep.subr.mxu0 0.0
        %565 = vmatpush1.msra.mxu0 0.0
        %566 = vmatprep.subr.mxu0 0.0
        %567 = vmatpush1.msra.mxu0 0.0
        %568 = vmatprep.subr.mxu0 0.0
        %569 = vmatpush1.msra.mxu0 0.0
        %570 = vmatprep.subr.mxu0 0.0
        %571 = vmatpush1.msra.mxu0 0.0
        %572 = vmatprep.subr.mxu0 0.0
        %573 = vmatpush1.msra.mxu0 0.0
        %574 = vmatprep.subr.mxu0 0.0
        %575 = vmatpush1.msra.mxu0 0.0
        %576 = vmatprep.mubr.f32.mxu0 0.0
        %577 = vmatmul.mubr.f32.gmra.mrb[0].mxu0 %v487
        %v578 = vpop.f32.mrb[0].mxu0
        %v579 = vadd.f32 %v510, %v578
        %v580 = vpop.f32.mrb[0].mxu0
        %581 = vmatprep.mubr.f32.mxu0 0.0
        %582 = vmatmul.mubr.f32.gmra.mrb[0].mxu0 %v488
        %v583 = vpop.f32.mrb[0].mxu0
        %v584 = vadd.f32 %v510, %v583
        %v585 = vpop.f32.mrb[0].mxu0
        %586 = vdwg.mxu0
        %vm587 = vcmask 31744
        %588 = vst.msk [vmem:[%s280] sm:$0xff] %vm587, %v579
        %589 = vst.msk [vmem:[%s280 + $0x8] sm:$0xff] %vm587, %v584
        %s590 = sand.u32 %s178, 1
        %s591 = sand.u32 %s178, 1
        %s592 = smul.addr %s591, 16
        %s593 = scalar_lea.vmem [#allocation2], %s592
        // Predicated region
        $region49: #{tpu_custom_call.1} parent=47 // pred_check
          %p594 = pneg %p188
        $region50: #{tpu_custom_call.1} parent=47 // pred_check_branch
          %596 = sbr.rel (%p594) target = $region52
        $region51: #{tpu_custom_call.1} parent=47 // pred_region
          %s597 = smul.u32 2, %s18
          %s598 = ssub.s32 3, %s597
          %p599 = scmp.lt.s32.totalorder %s598, 2
          %s600 = scalar_select %p599, %s598, 2
          %s601 = smul.u32 128, %s600
          %p602 = scmp.ne.s32.totalorder 0, %s601
          %s603 = smul.addr %s597, 8
          %s604 = scalar_lea.vmem %s7, %s603
          // Predicated region
          $region53: #{tpu_custom_call.1} parent=51 // pred_check
            %p605 = pneg %p602
          $region54: #{tpu_custom_call.1} parent=51 // pred_check_branch
            %607 = sbr.rel (%p605) target = $region56
          $region55: #{tpu_custom_call.1} parent=51 // pred_region
            // Predicated region
            $region57: #{tpu_custom_call.1} parent=55 // pred_check
              _
            $region58: #{tpu_custom_call.1} parent=55 // pred_check_branch
              %609 = sbr.rel (0) target = $region60
            $region59: #{tpu_custom_call.1} parent=55 // pred_region
              // Predicated region
              $region79: #{tpu_custom_call.1} parent=59 // pred_check
                _
              $region80: #{tpu_custom_call.1} parent=59 // pred_check_branch
                %660 = sbr.rel (0) target = $region82
              $region81: #{tpu_custom_call.1} parent=59 // pred_region
                %s661 = sshrl.u32 %s600, 1
                // While loop
                $region83: #{tpu_custom_call.1} parent=81 // loop_pre_header
                  _
                $region84: #{tpu_custom_call.1} parent=81 // loop_header
                  %s663 = sphi 0, %s665
                  %p664 = scmp.ge.s32.totalorder %s663, %s661
                  %s668 = sphi 0, %s677
                  %s669 = sphi %s593, %s680
                  %s670 = sphi %s604, %s681
                $region85: #{tpu_custom_call.1} parent=81 // loop_header_branch
                  %667 = sbr.rel (%p664) target = $region89
                $region86: #{tpu_custom_call.1} parent=81 // loop_body
                  %v671 = vld [vmem:[%s669] sm:$0xff]
                  %672 = vst [vmem:[%s670] sm:$0xff] %v671
                  %v673 = vld [vmem:[%s669 + $0x8] sm:$0xff]
                  %674 = vst [vmem:[%s670 + $0x8] sm:$0xff] %v673
                  %s675 = sadd.s32 1, %s668
                  %p676 = scmp.ge.s32.totalorder %s675, %s661
                  %s677 = scalar_select %p676, 0, %s675
                  %s678 = smul.u32 %s677, 16
                  %s679 = smul.u32 %s677, 16
                  %s680 = scalar_lea.vmem %s593, %s678 [#allocation2]
                  %s681 = scalar_lea.vmem %s604, %s679
                $region87: #{tpu_custom_call.1} parent=81 // loop_footer
                  %s665 = sadd.s32 %s663, 1
                $region88: #{tpu_custom_call.1} parent=81 // loop_footer_branch
                  %662 = sbr.rel target = $region84
                $region89: #{tpu_custom_call.1} parent=81 // loop_exit
                  _
                %s682 = sshrl.u32 %s600, 1
                %s683 = sand.u32 %s600, 1
                %s684 = smul.u32 %s682, 2
                %s685 = smul.u32 8, %s684
                %s686 = scalar_lea.vmem %s593, %s685 [#allocation2]
                %s687 = smul.u32 8, %s684
                %s688 = scalar_lea.vmem %s604, %s687
                // While loop
                $region90: #{tpu_custom_call.1} parent=81 // loop_pre_header
                  _
                $region91: #{tpu_custom_call.1} parent=81 // loop_header
                  %s690 = sphi 0, %s692
                  %p691 = scmp.ge.s32.totalorder %s690, %s683
                  %s695 = sphi 0, %s702
                  %s696 = sphi %s686, %s705
                  %s697 = sphi %s688, %s706
                $region92: #{tpu_custom_call.1} parent=81 // loop_header_branch
                  %694 = sbr.rel (%p691) target = $region96
                $region93: #{tpu_custom_call.1} parent=81 // loop_body
                  %v698 = vld [vmem:[%s696] sm:$0xff]
                  %699 = vst [vmem:[%s697] sm:$0xff] %v698
                  %s700 = sadd.s32 1, %s695
                  %p701 = scmp.ge.s32.totalorder %s700, %s683
                  %s702 = scalar_select %p701, 0, %s700
                  %s703 = smul.u32 %s702, 8
                  %s704 = smul.u32 %s702, 8
                  %s705 = scalar_lea.vmem %s686, %s703 [#allocation2]
                  %s706 = scalar_lea.vmem %s688, %s704
                $region94: #{tpu_custom_call.1} parent=81 // loop_footer
                  %s692 = sadd.s32 %s690, 1
                $region95: #{tpu_custom_call.1} parent=81 // loop_footer_branch
                  %689 = sbr.rel target = $region91
                $region96: #{tpu_custom_call.1} parent=81 // loop_exit
                  _
              $region82: #{tpu_custom_call.1} parent=59 // pred_fallthru
                _
              // Predicated region
              $region97: #{tpu_custom_call.1} parent=59 // pred_check
                _
              $region98: #{tpu_custom_call.1} parent=59 // pred_check_branch
                %708 = sbr.rel target = $region100
              $region99: #{tpu_custom_call.1} parent=59 // pred_region
                _
              $region100: #{tpu_custom_call.1} parent=59 // pred_fallthru
                _
            $region60: #{tpu_custom_call.1} parent=55 // pred_fallthru
              _
            // Predicated region
            $region61: #{tpu_custom_call.1} parent=55 // pred_check
              _
            $region62: #{tpu_custom_call.1} parent=55 // pred_check_branch
              %611 = sbr.rel target = $region64
            $region63: #{tpu_custom_call.1} parent=55 // pred_region
              %s613 = sshrl.u32 %s600, 1
              // While loop
              $region65: #{tpu_custom_call.1} parent=63 // loop_pre_header
                _
              $region66: #{tpu_custom_call.1} parent=63 // loop_header
                %s615 = sphi 0, %s617
                %p616 = scmp.ge.s32.totalorder %s615, %s613
                %s620 = sphi 0, %s629
                %s621 = sphi %s593, %s632
                %s622 = sphi %s604, %s633
              $region67: #{tpu_custom_call.1} parent=63 // loop_header_branch
                %619 = sbr.rel (%p616) target = $region71
              $region68: #{tpu_custom_call.1} parent=63 // loop_body
                %v623 = vld [vmem:[%s621] sm:$0xff]
                %624 = vst [vmem:[%s622] sm:$0xff] %v623
                %v625 = vld [vmem:[%s621 + $0x8] sm:$0xff]
                %626 = vst [vmem:[%s622 + $0x8] sm:$0xff] %v625
                %s627 = sadd.s32 1, %s620
                %p628 = scmp.ge.s32.totalorder %s627, %s613
                %s629 = scalar_select %p628, 0, %s627
                %s630 = smul.u32 %s629, 16
                %s631 = smul.u32 %s629, 16
                %s632 = scalar_lea.vmem %s593, %s630 [#allocation2]
                %s633 = scalar_lea.vmem %s604, %s631
              $region69: #{tpu_custom_call.1} parent=63 // loop_footer
                %s617 = sadd.s32 %s615, 1
              $region70: #{tpu_custom_call.1} parent=63 // loop_footer_branch
                %614 = sbr.rel target = $region66
              $region71: #{tpu_custom_call.1} parent=63 // loop_exit
                _
              %s634 = sshrl.u32 %s600, 1
              %s635 = sand.u32 %s600, 1
              %s636 = smul.u32 %s634, 2
              %s637 = smul.u32 8, %s636
              %s638 = scalar_lea.vmem %s593, %s637 [#allocation2]
              %s639 = smul.u32 8, %s636
              %s640 = scalar_lea.vmem %s604, %s639
              // While loop
              $region72: #{tpu_custom_call.1} parent=63 // loop_pre_header
                _
              $region73: #{tpu_custom_call.1} parent=63 // loop_header
                %s642 = sphi 0, %s644
                %p643 = scmp.ge.s32.totalorder %s642, %s635
                %s647 = sphi 0, %s654
                %s648 = sphi %s638, %s657
                %s649 = sphi %s640, %s658
              $region74: #{tpu_custom_call.1} parent=63 // loop_header_branch
                %646 = sbr.rel (%p643) target = $region78
              $region75: #{tpu_custom_call.1} parent=63 // loop_body
                %v650 = vld [vmem:[%s648] sm:$0xff]
                %651 = vst [vmem:[%s649] sm:$0xff] %v650
                %s652 = sadd.s32 1, %s647
                %p653 = scmp.ge.s32.totalorder %s652, %s635
                %s654 = scalar_select %p653, 0, %s652
                %s655 = smul.u32 %s654, 8
                %s656 = smul.u32 %s654, 8
                %s657 = scalar_lea.vmem %s638, %s655 [#allocation2]
                %s658 = scalar_lea.vmem %s640, %s656
              $region76: #{tpu_custom_call.1} parent=63 // loop_footer
                %s644 = sadd.s32 %s642, 1
              $region77: #{tpu_custom_call.1} parent=63 // loop_footer_branch
                %641 = sbr.rel target = $region73
              $region78: #{tpu_custom_call.1} parent=63 // loop_exit
                _
            $region64: #{tpu_custom_call.1} parent=55 // pred_fallthru
              _
          $region56: #{tpu_custom_call.1} parent=51 // pred_fallthru
            _
          %709 = vnop
        $region52: #{tpu_custom_call.1} parent=47 // pred_fallthru
          _
      $region48: #{tpu_custom_call.1} parent=5 // pred_fallthru
        _
      %p710 = scmp.le.s32.totalorder 2, %s13
      // Predicated region
      $region101: #{tpu_custom_call.1} parent=5 // pred_check
        %p711 = pneg %p710
      $region102: #{tpu_custom_call.1} parent=5 // pred_check_branch
        %713 = sbr.rel (%p711) target = $region104
      $region103: #{tpu_custom_call.1} parent=5 // pred_region
        %s714 = ssub.s32 %s13, 2
        // Predicated region
        $region105: #{tpu_custom_call.1} parent=103 // pred_check
          %p715 = pneg %p194
        $region106: #{tpu_custom_call.1} parent=103 // pred_check_branch
          %717 = sbr.rel (%p715) target = $region108
        $region107: #{tpu_custom_call.1} parent=103 // pred_region
          %s718 = sand.u32 %s179, 1
          %s719 = sand.u32 %s179, 1
          %s720 = smul.addr %s719, 16
          %s721 = scalar_lea.vmem [#allocation2], %s720
        $region108: #{tpu_custom_call.1} parent=103 // pred_fallthru
          _
      $region104: #{tpu_custom_call.1} parent=5 // pred_fallthru
        _
    $region6: #{tpu_custom_call.1} parent=1 // loop_footer
      %s17 = sadd.s32 1, %s13
    $region7: #{tpu_custom_call.1} parent=1 // loop_footer_branch
      %12 = sbr.rel target = $region3
    $region8: #{tpu_custom_call.1} parent=1 // loop_exit
      _

</llo_original>
